<compile_context>
chip_gen: v7x
topology: tpu7x:2x2x1
jax: 0.10.0
libtpu: 0.0.40
codegen_flags: <defaults>
</compile_context>

<pallas_src>
import functools
import math

import jax
import jax.numpy as jnp
import numpy as np
from jax.experimental import pallas as pl
from jax.experimental.pallas import tpu as pltpu


# --------------------------- tiled linear kernel -----------------------------

def _linear_kernel(x_ref, w_ref, b_ref, o_ref, acc_ref, *, compute_dtype):
    @pl.when(pl.program_id(2) == 0)
    def _():
        acc_ref[...] = jnp.zeros_like(acc_ref)

    acc_ref[...] += jnp.dot(
        x_ref[...].astype(compute_dtype),
        w_ref[...].astype(compute_dtype),
        preferred_element_type=jnp.float32)

    @pl.when(pl.program_id(2) == pl.num_programs(2) - 1)
    def _():
        o_ref[...] = (acc_ref[...] + b_ref[...]).astype(o_ref.dtype)


def _pick_tile(dim, pref):
    """Largest tile <= pref that divides dim (prefers 128- / 8-multiples)."""
    if dim <= pref:
        return dim
    for base in (128, 8):
        t = (pref // base) * base
        while t >= base:
            if dim % t == 0:
                return t
            t -= base
    return dim  # fallback: one oversized block (only for awkward prime-ish dims)


def linear(x2d, w, b, compute_dtype, out_dtype=jnp.float32):
    """y = x2d @ w + b ; x2d (M, K), w (K, N), b (1, N) -> (M, N) out_dtype."""
    M, K = x2d.shape
    N = w.shape[1]
    tm = _pick_tile(M, 512)
    tn = _pick_tile(N, 512)
    tk = _pick_tile(K, 512)
    kern = functools.partial(_linear_kernel, compute_dtype=compute_dtype)
    return pl.pallas_call(
        kern,
        out_shape=jax.ShapeDtypeStruct((M, N), out_dtype),
        grid=(M // tm, N // tn, K // tk),
        in_specs=[
            pl.BlockSpec((tm, tk), lambda i, j, k: (i, k)),
            pl.BlockSpec((tk, tn), lambda i, j, k: (k, j)),
            pl.BlockSpec((1, tn), lambda i, j, k: (0, j)),
        ],
        out_specs=pl.BlockSpec((tm, tn), lambda i, j, k: (i, j)),
        scratch_shapes=[pltpu.VMEM((tm, tn), jnp.float32)],
        compiler_params=pltpu.CompilerParams(
            dimension_semantics=("parallel", "parallel", "arbitrary")),
    )(x2d, w, b)


# ----------------------- fused relative attention kernel ---------------------

def _relative_shift_block(ps):
    """Exact Transformer-XL relative shift of a (T, T) score block, in VMEM.

    Torch semantics (pad zero column, view (T+1, T), drop first row, view back)
    are equivalent to:
        out[a, b] = ps[a,   T - 1 + b - a]   for b <= a
        out[a, b] = 0                        for b == a + 1
        out[a, b] = ps[a+1, b - a - 2]       for b >  a + 1
    Implemented on the aligned (T, T) block with static lane rolls only
    (barrel shifter over the row index): no pads, no reshapes, no gathers.
    """
    T = ps.shape[0]
    row = jax.lax.broadcasted_iota(jnp.int32, (T, T), 0)
    col = jax.lax.broadcasted_iota(jnp.int32, (T, T), 1)

    # R[a, b] = ps[a, (b - a - 1) mod T]  == row a rolled right by (a + 1).
    # Start with a global roll-right by 1, then barrel-shift by the row index.
    cur = jnp.concatenate([ps[:, T - 1:], ps[:, :T - 1]], axis=1)
    nbits = max(1, (T - 1).bit_length())
    for bit in range(nbits):
        amt = (1 << bit) % T
        if amt == 0:
            continue
        rolled = jnp.concatenate([cur[:, T - amt:], cur[:, :T - amt]], axis=1)
        take = ((row >> bit) & 1) == 1
        cur = jnp.where(take, rolled, cur)
    r_same = cur                                   # R[a, b]

    # R shifted up one row: r_next[a, b] = R[a+1, b] (wrap row is masked out).
    if T > 1:
        r_next = jnp.concatenate([r_same[1:, :], r_same[:1, :]], axis=0)
    else:
        r_next = r_same

    return jnp.where(col <= row, r_same,
                     jnp.where(col == row + 1, jnp.zeros_like(r_same), r_next))


def _fused_rel_attn_kernel(*refs, hsub, d_head, inv_sqrt_dim, compute_dtype,
                           has_mask):
    if has_mask:
        q_ref, k_ref, v_ref, p_ref, u_ref, vb_ref, m_ref, o_ref = refs
        key_masked = m_ref[0] != 0                 # (1, T) bool, True -> masked
    else:
        q_ref, k_ref, v_ref, p_ref, u_ref, vb_ref, o_ref = refs
        key_masked = None

    approx_recip = compute_dtype != jnp.float32

    for h in range(hsub):                          # static unroll over head group
        c0, c1 = h * d_head, (h + 1) * d_head
        q = q_ref[:, c0:c1].astype(jnp.float32)    # (T, Dh)
        k = k_ref[:, c0:c1]
        v = v_ref[:, c0:c1]
        p = p_ref[:, c0:c1]
        u = u_ref[h:h + 1, :]                      # (1, Dh) f32
        vb = vb_ref[h:h + 1, :]

        # Fold the 1/sqrt(d_model) scale into q before the matmuls.
        qc = ((q + u) * inv_sqrt_dim).astype(compute_dtype)
        qp = ((q + vb) * inv_sqrt_dim).astype(compute_dtype)
        kc = k.astype(compute_dtype)
        pc = p.astype(compute_dtype)

        content = jax.lax.dot_general(
            qc, kc, (((1,), (1,)), ((), ())),
            preferred_element_type=jnp.float32)                  # (T, T)
        pos = jax.lax.dot_general(
            qp, pc, (((1,), (1,)), ((), ())),
            preferred_element_type=jnp.float32)                  # (T, T)

        score = content + _relative_shift_block(pos)
        if has_mask:
            # Exact masked_fill semantics: masked positions become -1e9.
            score = jnp.where(key_masked, jnp.float32(-1e9), score)

        smax = jnp.max(score, axis=-1, keepdims=True)
        e = jnp.exp(score - smax)
        denom = jnp.sum(e, axis=-1, keepdims=True)
        # TODO(synk): attention dropout (p=0.1) omitted -> eval-mode identity.
        ctx = jnp.dot(e.astype(compute_dtype), v.astype(compute_dtype),
                      preferred_element_type=jnp.float32)        # (T, Dh)
        ctx = ctx * pl.reciprocal(denom, approx=approx_recip)

        # Per-head store into the (T, hsub*Dh) output block (block writeback to
        # HBM stays lane-dense; live ranges stay bounded per head).
        o_ref[:, c0:c1] = ctx.astype(o_ref.dtype)


def fused_rel_attention(q2, k2, v2, p2, u_bias, v_bias, key_mask, *,
                        B, T, H, Dh, inv_sqrt_dim, compute_dtype, out_dtype):
    """q2/k2/v2/p2: (B*T, H*Dh).  Returns context in (B*T, H*Dh) out_dtype."""
    # Group heads so the block lane width is as wide as possible (>=128 when D
    # allows), keeping the output writeback unmasked / lane-dense.
    hsub = min(H, max(1, 128 // max(Dh, 1)))
    while H % hsub:
        hsub -= 1
    grid = (B, H // hsub)
    blk = (T, hsub * Dh)

    qkvp_spec = pl.BlockSpec(blk, lambda b, g: (b, g))
    bias_spec = pl.BlockSpec((hsub, Dh), lambda b, g: (g, 0))

    in_specs = [qkvp_spec, qkvp_spec, qkvp_spec, qkvp_spec, bias_spec, bias_spec]
    args = [q2, k2, v2, p2, u_bias, v_bias]
    if key_mask is not None:                       # compact (B, 1, T) int32
        in_specs.append(pl.BlockSpec((1, 1, T), lambda b, g: (b, 0, 0)))
        args.append(key_mask)

    kern = functools.partial(
        _fused_rel_attn_kernel, hsub=hsub, d_head=Dh,
        inv_sqrt_dim=inv_sqrt_dim, compute_dtype=compute_dtype,
        has_mask=key_mask is not None)

    return pl.pallas_call(
        kern,
        out_shape=jax.ShapeDtypeStruct((B * T, H * Dh), out_dtype),
        grid=grid,
        in_specs=in_specs,
        out_specs=pl.BlockSpec(blk, lambda b, g: (b, g)),
        compiler_params=pltpu.CompilerParams(
            dimension_semantics=("parallel", "parallel")),
    )(*args)


# ------------------------------- forward glue ---------------------------------

def relative_mha_forward(params, query, key, value, pos_embedding, mask=None,
                         compute_dtype=jnp.bfloat16):
    B, T, D = query.shape
    H, Dh = params["u_bias"].shape
    inv_sqrt_dim = 1.0 / math.sqrt(D)

    fast = compute_dtype != jnp.float32
    inter_dtype = jnp.bfloat16 if fast else jnp.float32   # q2/k2/v2/p2/ctx2
    w_dtype = jnp.bfloat16 if fast else jnp.float32       # streamed weights

    def wc(w):
        return w.astype(w_dtype)

    zero_bias = jnp.zeros((1, D), jnp.float32)

    # Projections (tiled Pallas matmuls), kept in (B*T, D) layout end to end.
    q2 = linear(query.reshape(B * T, D), wc(params["wq"]), params["bq"],
                compute_dtype, out_dtype=inter_dtype)
    k2 = linear(key.reshape(B * T, D), wc(params["wk"]), params["bk"],
                compute_dtype, out_dtype=inter_dtype)
    v2 = linear(value.reshape(B * T, D), wc(params["wv"]), params["bv"],
                compute_dtype, out_dtype=inter_dtype)
    p2 = linear(pos_embedding.reshape(B * T, D), wc(params["wp"]), zero_bias,
                compute_dtype, out_dtype=inter_dtype)

    # Compact key mask (B, 1, T) int32; -1e9 fill happens inside the kernel.
    if mask is not None:
        m = jnp.asarray(mask)
        if m.ndim == 2:
            m = m[:, None, :]
        if m.shape[-2] != 1:
            # TODO(synk): general (time1, time2) masks not fused yet.
            raise NotImplementedError("only (batch, 1, time) key masks are fused")
        key_mask = jnp.broadcast_to(m.astype(jnp.int32), (B, 1, T))
    else:
        key_mask = None

    ctx2 = fused_rel_attention(q2, k2, v2, p2, params["u_bias"], params["v_bias"],
                               key_mask, B=B, T=T, H=H, Dh=Dh,
                               inv_sqrt_dim=inv_sqrt_dim,
                               compute_dtype=compute_dtype,
                               out_dtype=inter_dtype)

    out = linear(ctx2, wc(params["wo"]), params["bo"], compute_dtype,
                 out_dtype=jnp.float32)
    return out.reshape(B, T, D)


# -------------------------- pure-JAX reference --------------------------------

def _relative_shift_ref(pos_score):
    B, H, T1, T2 = pos_score.shape
    zeros = jnp.zeros((B, H, T1, 1), pos_score.dtype)
    padded = jnp.concatenate([zeros, pos_score], axis=-1)
    padded = padded.reshape(B, H, T2 + 1, T1)
    return padded[:, :, 1:, :].reshape(B, H, T1, T2)


def reference_forward(params, query, key, value, pos_embedding, mask=None):
    B, T, D = query.shape
    H, Dh = params["u_bias"].shape
    hp = jax.lax.Precision.HIGHEST
    sqrt_dim = math.sqrt(D)

    def lin(x, w, b):
        return (jnp.dot(x.reshape(-1, D), w, precision=hp) + b).reshape(B, T, D)

    q = lin(query, params["wq"], params["bq"]).reshape(B, T, H, Dh)
    k = lin(key, params["wk"], params["bk"]).reshape(B, T, H, Dh).transpose(0, 2, 1, 3)
    v = lin(value, params["wv"], params["bv"]).reshape(B, T, H, Dh).transpose(0, 2, 1, 3)
    p = lin(pos_embedding, params["wp"], jnp.zeros((1, D), jnp.float32)).reshape(B, T, H, Dh)

    content = jnp.einsum("bthd,bhsd->bhts", q + params["u_bias"], k, precision=hp)
    pos_score = jnp.einsum("bthd,bshd->bhts", q + params["v_bias"], p, precision=hp)
    pos_score = _relative_shift_ref(pos_score)
    score = (content + pos_score) / sqrt_dim
    if mask is not None:
        m = jnp.broadcast_to(mask.astype(bool), (B, T, T))[:, None, :, :]
        score = jnp.where(m, jnp.float32(-1e9), score)
    attn = jax.nn.softmax(score, axis=-1)
    ctx = jnp.einsum("bhts,bhsd->bthd", attn, v, precision=hp).reshape(B * T, D)
    out = jnp.dot(ctx, params["wo"], precision=hp) + params["bo"]
    return out.reshape(B, T, D)


# ------------------------------ params / main ---------------------------------

def init_params(key, d_model, num_heads):
    d_head = d_model // num_heads
    ks = jax.random.split(key, 11)

    def xav(k, fin, fout):
        lim = math.sqrt(6.0 / (fin + fout))
        return jax.random.uniform(k, (fin, fout), jnp.float32, -lim, lim)

    return dict(
        wq=xav(ks[0], d_model, d_model),
        bq=0.01 * jax.random.normal(ks[1], (1, d_model), jnp.float32),
        wk=xav(ks[2], d_model, d_model),
        bk=0.01 * jax.random.normal(ks[3], (1, d_model), jnp.float32),
        wv=xav(ks[4], d_model, d_model),
        bv=0.01 * jax.random.normal(ks[5], (1, d_model), jnp.float32),
        wp=xav(ks[6], d_model, d_model),          # pos_proj: no bias
        wo=xav(ks[7], d_model, d_model),
        bo=0.01 * jax.random.normal(ks[8], (1, d_model), jnp.float32),
        u_bias=xav(ks[9], num_heads, d_head),
        v_bias=xav(ks[10], num_heads, d_head),
    )


if __name__ == "__main__":
    B, T, D, H = 2, 8, 32, 4   # batch, seq, d_model, num_heads  (d_head = 8)

    root = jax.random.PRNGKey(0)
    kparams, kq, kk, kv, kp = jax.random.split(root, 5)
    params = init_params(kparams, D, H)

    query = jax.random.normal(kq, (B, T, D), jnp.float32)
    key_in = jax.random.normal(kk, (B, T, D), jnp.float32)
    value = jax.random.normal(kv, (B, T, D), jnp.float32)
    pos_emb = jax.random.normal(kp, (B, T, D), jnp.float32)
    mask = jnp.arange(T)[None, None, :] >= (T - 2)   # (1, 1, T) bool key mask

    ref = reference_forward(params, query, key_in, value, pos_emb, mask=None)
    ref_m = reference_forward(params, query, key_in, value, pos_emb, mask=mask)

    # 1) float32 compute path: check structure / relative shift / masking.
    out_f32 = jax.block_until_ready(relative_mha_forward(
        params, query, key_in, value, pos_emb, mask=None,
        compute_dtype=jnp.float32))
    np.testing.assert_allclose(np.asarray(out_f32), np.asarray(ref),
                               atol=2e-2, rtol=2e-2)

    out_f32_m = jax.block_until_ready(relative_mha_forward(
        params, query, key_in, value, pos_emb, mask=mask,
        compute_dtype=jnp.float32))
    np.testing.assert_allclose(np.asarray(out_f32_m), np.asarray(ref_m),
                               atol=2e-2, rtol=2e-2)

    # 2) bfloat16 MXU fast path (f32 accumulation, bf16 intermediates/weights):
    #    looser numeric check.
    out_bf16 = jax.block_until_ready(relative_mha_forward(
        params, query, key_in, value, pos_emb, mask=None,
        compute_dtype=jnp.bfloat16))
    np.testing.assert_allclose(np.asarray(out_bf16), np.asarray(ref),
                               atol=1e-1, rtol=1e-1)

    print("KERNEL_OK")
</pallas_src>

<mosaic_0001>
module attributes {stable_mosaic.version = 11 : i64} {
  func.func @_linear_kernel(%arg0: i32, %arg1: i32, %arg2: i32, %arg3: memref<16x32xf32, #tpu.memory_space<vmem>>, %arg4: memref<32x32xf32, #tpu.memory_space<vmem>>, %arg5: memref<1x32xf32, #tpu.memory_space<vmem>>, %arg6: memref<16x32xf32, #tpu.memory_space<vmem>>, %arg7: memref<16x32xf32, #tpu.memory_space<vmem>>) attributes {dimension_semantics = [#tpu.dimension_semantics<parallel>, #tpu.dimension_semantics<parallel>, #tpu.dimension_semantics<arbitrary>], iteration_bounds = array<i64: 1, 1, 1>, scalar_prefetch = 0 : i64, scratch_operands = 1 : i64, tpu.core_type = #tpu.core_type<tc>, window_params = [{transform_indices = @transform_0, window_bounds = array<i64: 16, 32>}, {transform_indices = @transform_1, window_bounds = array<i64: 32, 32>}, {transform_indices = @transform_2, window_bounds = array<i64: 1, 32>}, {transform_indices = @transform_3, window_bounds = array<i64: 16, 32>}]} {
    %c0_i32 = arith.constant 0 : i32
    %0 = arith.cmpi eq, %arg2, %c0_i32 : i32
    %1 = arith.extui %0 : i1 to i32
    %c0_i32_0 = arith.constant 0 : i32
    %2 = arith.cmpi ne, %1, %c0_i32_0 : i32
    scf.if %2 {
      %cst_10 = arith.constant 0.000000e+00 : f32
      %12 = vector.broadcast %cst_10 : f32 to vector<16x32xf32>
      %c0_11 = arith.constant 0 : index
      %c0_12 = arith.constant 0 : index
      %13 = vector.load %arg7[%c0_11, %c0_12] : memref<16x32xf32, #tpu.memory_space<vmem>>, vector<16x32xf32>
      tpu.vector_store %arg7[%c0_11, %c0_12], %12 {strides = array<i32>} : memref<16x32xf32, #tpu.memory_space<vmem>>, vector<16x32xf32>,
    } else {
    }
    %c0 = arith.constant 0 : index
    %c0_1 = arith.constant 0 : index
    %3 = vector.load %arg7[%c0, %c0_1] : memref<16x32xf32, #tpu.memory_space<vmem>>, vector<16x32xf32>
    %c0_2 = arith.constant 0 : index
    %c0_3 = arith.constant 0 : index
    %4 = vector.load %arg3[%c0_2, %c0_3] : memref<16x32xf32, #tpu.memory_space<vmem>>, vector<16x32xf32>
    %c0_4 = arith.constant 0 : index
    %c0_5 = arith.constant 0 : index
    %5 = vector.load %arg4[%c0_4, %c0_5] : memref<32x32xf32, #tpu.memory_space<vmem>>, vector<32x32xf32>
    %cst = arith.constant dense<0.000000e+00> : vector<16x32xf32>
    %6 = tpu.matmul %4, %5, %cst {dimension_numbers = #tpu.dot_dimension_numbers<[1], [0], [0], [1], [0, 0, 1, 1], [], []>} : vector<16x32xf32>, vector<32x32xf32>, vector<16x32xf32> -> vector<16x32xf32>
    %7 = arith.addf %3, %6 : vector<16x32xf32>
    %c0_6 = arith.constant 0 : index
    %c0_7 = arith.constant 0 : index
    %8 = vector.load %arg7[%c0_6, %c0_7] : memref<16x32xf32, #tpu.memory_space<vmem>>, vector<16x32xf32>
    tpu.vector_store %arg7[%c0_6, %c0_7], %7 {strides = array<i32>} : memref<16x32xf32, #tpu.memory_space<vmem>>, vector<16x32xf32>,
    %c0_i32_8 = arith.constant 0 : i32
    %9 = arith.cmpi eq, %arg2, %c0_i32_8 : i32
    %10 = arith.extui %9 : i1 to i32
    %c0_i32_9 = arith.constant 0 : i32
    %11 = arith.cmpi ne, %10, %c0_i32_9 : i32
    scf.if %11 {
      %c0_10 = arith.constant 0 : index
      %c0_11 = arith.constant 0 : index
      %12 = vector.load %arg7[%c0_10, %c0_11] : memref<16x32xf32, #tpu.memory_space<vmem>>, vector<16x32xf32>
      %c0_12 = arith.constant 0 : index
      %c0_13 = arith.constant 0 : index
      %13 = vector.load %arg5[%c0_12, %c0_13] : memref<1x32xf32, #tpu.memory_space<vmem>>, vector<1x32xf32>
      %14 = vector.broadcast %13 : vector<1x32xf32> to vector<16x32xf32>
      %15 = arith.addf %12, %14 : vector<16x32xf32>
      %c0_14 = arith.constant 0 : index
      %c0_15 = arith.constant 0 : index
      %16 = vector.load %arg6[%c0_14, %c0_15] : memref<16x32xf32, #tpu.memory_space<vmem>>, vector<16x32xf32>
      tpu.vector_store %arg6[%c0_14, %c0_15], %15 {strides = array<i32>} : memref<16x32xf32, #tpu.memory_space<vmem>>, vector<16x32xf32>,
    } else {
    }
    return
  }
  func.func @transform_0(%arg0: i32, %arg1: i32, %arg2: i32) -> (i32, i32) {
    %c0_i32 = arith.constant 0 : i32
    return %arg0, %arg2 : i32, i32
  }
  func.func @transform_1(%arg0: i32, %arg1: i32, %arg2: i32) -> (i32, i32) {
    %c0_i32 = arith.constant 0 : i32
    return %arg2, %arg1 : i32, i32
  }
  func.func @transform_2(%arg0: i32, %arg1: i32, %arg2: i32) -> (i32, i32) {
    %c0_i32 = arith.constant 0 : i32
    %c0_i32_0 = arith.constant 0 : i32
    return %c0_i32, %arg1 : i32, i32
  }
  func.func @transform_3(%arg0: i32, %arg1: i32, %arg2: i32) -> (i32, i32) {
    %c0_i32 = arith.constant 0 : i32
    return %arg0, %arg1 : i32, i32
  }
}

</mosaic_0001>

<llo_original>
// kernel: tpu_custom_call.1
$region0: #{tpu_custom_call.1}
  #allocation0 [shape = 'u32[]', space=smem, size = 0x4, offset = 0x4, fixed_abs, tag = 'smem constant byte address 0x4 - core index']
  #allocation1 [shape = 'u32[144,128]{1,0:T(1,128)}', space=vmem, size = 0x12000, scoped, tag = 'internal scratch']
  #allocation2 [shape = 'f32[16,32]{1,0:T(8,128)}', space=vmem, size = 0x2000, scoped, tag = 'scratch operand']
  %s0 = inlined_call_operand.hbm [shape: f32[16,32], index: 0, kind: input, shape index: {}]
  %s1 = inlined_call_operand.hbm [shape: f32[32,32], index: 1, kind: input, shape index: {}]
  %s2 = inlined_call_operand.vmem [shape: f32[1,32], index: 2, kind: input, shape index: {}]
  %s3 = inlined_call_operand.hbm [shape: f32[16,32], index: 3, kind: output, shape index: {}]
  %s4 = sld [smem:[#allocation0]]
  $region38: #{tpu_custom_call.1} parent=0
    _
  %s6 = ssub.s32 1, %s4
  %s7 = scalar_select 0, %s6, %s4
  $region1: #{tpu_custom_call.1} parent=0
    #allocation3 [shape = 'u8[8192]{0}', space=vmem, size = 0x2000, scoped, tag = 'input window, operand 0, single buffered']
    #allocation4 [shape = 's32[1]{0}', space=sflag, size = 0x4, scoped, tag = 'scoped memory for tpu_custom_call.1']
    #allocation5 [shape = 's32[1]{0}', space=sflag, size = 0x4, scoped, tag = 'scoped memory for tpu_custom_call.1']
    #allocation6 [shape = 'u8[16384]{0}', space=vmem, size = 0x4000, scoped, tag = 'input window, operand 1, single buffered']
    #allocation7 [shape = 's32[1]{0}', space=sflag, size = 0x4, scoped, tag = 'scoped memory for tpu_custom_call.1']
    #allocation8 [shape = 'u8[8192]{0}', space=vmem, size = 0x2000, scoped, tag = 'output window, operand 0, single buffered']
    %8 = vsyncpa [#allocation4], 0
    %9 = vsyncpa [#allocation7], 0
    %10 = vsyncpa [#allocation5], 0
    // Predicated region
    $region2: #{tpu_custom_call.1} parent=1 // pred_check
      _
    $region3: #{tpu_custom_call.1} parent=1 // pred_check_branch
      %12 = sbr.rel (0) target = $region5
    $region4: #{tpu_custom_call.1} parent=1 // pred_region
      %s14 = ssub.s32 256, 256
      %15 = vsyncadd [#allocation4], %s14
      %s16 = sshll.u32 [#allocation3], 4
      %s17 = int_to_ptr.vmem [resolvable:$true] %s16
      %22 = dma.hbm_to_vmem [thread:$0]  %s0, 256, %s17, [#allocation4], 128, 128, 8
    $region5: #{tpu_custom_call.1} parent=1 // pred_fallthru
      _
    // Predicated region
    $region6: #{tpu_custom_call.1} parent=1 // pred_check
      _
    $region7: #{tpu_custom_call.1} parent=1 // pred_check_branch
      %24 = sbr.rel (0) target = $region9
    $region8: #{tpu_custom_call.1} parent=1 // pred_region
      %s26 = ssub.s32 512, 512
      %27 = vsyncadd [#allocation7], %s26
      %s28 = sshll.u32 [#allocation6], 4
      %s29 = int_to_ptr.vmem [resolvable:$true] %s28
      %34 = dma.hbm_to_vmem [thread:$0]  %s1, 512, %s29, [#allocation7], 128, 128, 8
    $region9: #{tpu_custom_call.1} parent=1 // pred_fallthru
      _
    // Predicated region
    $region10: #{tpu_custom_call.1} parent=1 // pred_check
      _
    $region11: #{tpu_custom_call.1} parent=1 // pred_check_branch
      %36 = sbr.rel (0) target = $region13
    $region12: #{tpu_custom_call.1} parent=1 // pred_region
      _
    $region13: #{tpu_custom_call.1} parent=1 // pred_fallthru
      _
    // Predicated region
    $region14: #{tpu_custom_call.1} parent=1 // pred_check
      _
    $region15: #{tpu_custom_call.1} parent=1 // pred_check_branch
      %38 = sbr.rel (0) target = $region17
    $region16: #{tpu_custom_call.1} parent=1 // pred_region
      %39 = dma.done [#allocation4], 256
    $region17: #{tpu_custom_call.1} parent=1 // pred_fallthru
      _
    // Predicated region
    $region18: #{tpu_custom_call.1} parent=1 // pred_check
      _
    $region19: #{tpu_custom_call.1} parent=1 // pred_check_branch
      %41 = sbr.rel (0) target = $region21
    $region20: #{tpu_custom_call.1} parent=1 // pred_region
      %42 = dma.done [#allocation7], 512
    $region21: #{tpu_custom_call.1} parent=1 // pred_fallthru
      _
    %p43 = scmp.eq.s32.totalorder 0, 0
    // Predicated region
    $region22: #{tpu_custom_call.1} parent=1 // pred_check
      %p44 = pneg %p43
    $region23: #{tpu_custom_call.1} parent=1 // pred_check_branch
      %46 = sbr.rel (%p44) target = $region25
    $region24: #{tpu_custom_call.1} parent=1 // pred_region
      %vm47 = vcmask 261120
      %48 = vst.msk [vmem:[#allocation2] sm:$0xff] %vm47, 0.0
      %49 = vst.msk [vmem:[#allocation2 + $0x8] sm:$0xff] %vm47, 0.0
    $region25: #{tpu_custom_call.1} parent=1 // pred_fallthru
      _
    %v50 = vld [vmem:[#allocation2] sm:$0xff]
    %v51 = vld [vmem:[#allocation2 + $0x8] sm:$0xff]
    %v52 = vld [vmem:[#allocation3] sm:$0xff]
    %v53 = vld [vmem:[#allocation3 + $0x8] sm:$0xff]
    %v54 = vld [vmem:[#allocation6] sm:$0xff]
    %v55 = vld [vmem:[#allocation6 + $0x8] sm:$0xff]
    %v56 = vld [vmem:[#allocation6 + $0x10] sm:$0xff]
    %v57 = vld [vmem:[#allocation6 + $0x18] sm:$0xff]
    %vm58 = vcmask 261120
    %v60 = vsel %vm58, %v52, 0
    %v63 = vsel %vm58, %v53, 0
    %65 = vmatprep.subr.mxu0 0.0
    %66 = vmatpush1.msra.mxu0 %v54
    %67 = vmatprep.subr.mxu0 0.0
    %68 = vmatpush1.msra.mxu0 %v55
    %69 = vmatprep.subr.mxu0 0.0
    %70 = vmatpush1.msra.mxu0 %v56
    %71 = vmatprep.subr.mxu0 0.0
    %72 = vmatpush1.msra.mxu0 %v57
    %73 = vmatprep.subr.mxu0 0.0
    %74 = vmatpush1.msra.mxu0 0.0
    %75 = vmatprep.subr.mxu0 0.0
    %76 = vmatpush1.msra.mxu0 0.0
    %77 = vmatprep.subr.mxu0 0.0
    %78 = vmatpush1.msra.mxu0 0.0
    %79 = vmatprep.subr.mxu0 0.0
    %80 = vmatpush1.msra.mxu0 0.0
    %81 = vmatprep.subr.mxu0 0.0
    %82 = vmatpush1.msra.mxu0 0.0
    %83 = vmatprep.subr.mxu0 0.0
    %84 = vmatpush1.msra.mxu0 0.0
    %85 = vmatprep.subr.mxu0 0.0
    %86 = vmatpush1.msra.mxu0 0.0
    %87 = vmatprep.subr.mxu0 0.0
    %88 = vmatpush1.msra.mxu0 0.0
    %89 = vmatprep.subr.mxu0 0.0
    %90 = vmatpush1.msra.mxu0 0.0
    %91 = vmatprep.subr.mxu0 0.0
    %92 = vmatpush1.msra.mxu0 0.0
    %93 = vmatprep.subr.mxu0 0.0
    %94 = vmatpush1.msra.mxu0 0.0
    %95 = vmatprep.subr.mxu0 0.0
    %96 = vmatpush1.msra.mxu0 0.0
    %97 = vmatprep.subr.mxu0 0.0
    %98 = vmatpush1.msra.mxu0 0.0
    %99 = vmatprep.subr.mxu0 0.0
    %100 = vmatpush1.msra.mxu0 0.0
    %101 = vmatprep.subr.mxu0 0.0
    %102 = vmatpush1.msra.mxu0 0.0
    %103 = vmatprep.subr.mxu0 0.0
    %104 = vmatpush1.msra.mxu0 0.0
    %105 = vmatprep.subr.mxu0 0.0
    %106 = vmatpush1.msra.mxu0 0.0
    %107 = vmatprep.subr.mxu0 0.0
    %108 = vmatpush1.msra.mxu0 0.0
    %109 = vmatprep.subr.mxu0 0.0
    %110 = vmatpush1.msra.mxu0 0.0
    %111 = vmatprep.subr.mxu0 0.0
    %112 = vmatpush1.msra.mxu0 0.0
    %113 = vmatprep.subr.mxu0 0.0
    %114 = vmatpush1.msra.mxu0 0.0
    %115 = vmatprep.subr.mxu0 0.0
    %116 = vmatpush1.msra.mxu0 0.0
    %117 = vmatprep.subr.mxu0 0.0
    %118 = vmatpush1.msra.mxu0 0.0
    %119 = vmatprep.subr.mxu0 0.0
    %120 = vmatpush1.msra.mxu0 0.0
    %121 = vmatprep.subr.mxu0 0.0
    %122 = vmatpush1.msra.mxu0 0.0
    %123 = vmatprep.subr.mxu0 0.0
    %124 = vmatpush1.msra.mxu0 0.0
    %125 = vmatprep.subr.mxu0 0.0
    %126 = vmatpush1.msra.mxu0 0.0
    %127 = vmatprep.subr.mxu0 0.0
    %128 = vmatpush1.msra.mxu0 0.0
    %129 = vmatprep.mubr.f32.mxu0 0.0
    %130 = vmatmul.mubr.f32.gmra.mrb[0].mxu0 %v60
    %v131 = vpop.f32.mrb[0].mxu0
    %v132 = vadd.f32 0.0, %v131
    %v133 = vpop.f32.mrb[0].mxu0
    %134 = vmatprep.mubr.f32.mxu0 0.0
    %135 = vmatmul.mubr.f32.gmra.mrb[0].mxu0 %v63
    %v136 = vpop.f32.mrb[0].mxu0
    %v137 = vadd.f32 0.0, %v136
    %v138 = vpop.f32.mrb[0].mxu0
    %139 = vdwg.mxu0
    %v140 = vadd.f32 %v50, %v132
    %v141 = vadd.f32 %v51, %v137
    %142 = vst.msk [vmem:[#allocation2] sm:$0xff] %vm58, %v140
    %143 = vst.msk [vmem:[#allocation2 + $0x8] sm:$0xff] %vm58, %v141
    // Predicated region
    $region26: #{tpu_custom_call.1} parent=1 // pred_check
      %p144 = pneg %p43
    $region27: #{tpu_custom_call.1} parent=1 // pred_check_branch
      %146 = sbr.rel (%p144) target = $region29
    $region28: #{tpu_custom_call.1} parent=1 // pred_region
      %v147 = vld [vmem:[#allocation2] sm:$0xff]
      %v148 = vld [vmem:[#allocation2 + $0x8] sm:$0xff]
      %v149 = vld [vmem:[%s2] sm:$0x1]
      %v151 = vlaneseq
      %v152 = vshrl.u32 %v151, 7
      %v153 = vsub.s32 0, %v152
      %v154 = vrot.slane %v149, %v153
      %v156 = vadd.f32 %v147, %v154
      %v157 = vadd.f32 %v148, %v154
      %158 = vst.msk [vmem:[#allocation8] sm:$0xff] %vm58, %v156
      %159 = vst.msk [vmem:[#allocation8 + $0x8] sm:$0xff] %vm58, %v157
    $region29: #{tpu_custom_call.1} parent=1 // pred_fallthru
      _
    // Predicated region
    $region30: #{tpu_custom_call.1} parent=1 // pred_check
      _
    $region31: #{tpu_custom_call.1} parent=1 // pred_check_branch
      %161 = sbr.rel (0) target = $region33
    $region32: #{tpu_custom_call.1} parent=1 // pred_region
      %s163 = ssub.s32 256, 256
      %164 = vsyncadd [#allocation5], %s163
      %s165 = sshll.u32 [#allocation8], 4
      %s166 = int_to_ptr.vmem [resolvable:$true] %s165
      %171 = dma.vmem_to_hbm [thread:$0]  %s166, 256, %s3, [#allocation5], 128, 128, 8
    $region33: #{tpu_custom_call.1} parent=1 // pred_fallthru
      _
    // Predicated region
    $region34: #{tpu_custom_call.1} parent=1 // pred_check
      _
    $region35: #{tpu_custom_call.1} parent=1 // pred_check_branch
      %173 = sbr.rel (0) target = $region37
    $region36: #{tpu_custom_call.1} parent=1 // pred_region
      %174 = dma.done [#allocation5], 256
    $region37: #{tpu_custom_call.1} parent=1 // pred_fallthru
      _
    %175 = vsyncpa [#allocation4], 1
    %176 = vsyncpa [#allocation7], 1
    %177 = vsyncpa [#allocation5], 1

</llo_original>
